<compile_context>
chip_gen: v6e
topology: v6e:2x2x1
jax: 0.10.0
libtpu: 0.0.40
codegen_flags: <defaults>
</compile_context>

<pallas_src>
import jax
import jax.numpy as jnp
from jax.experimental import pallas as pl
from jax.experimental.pallas import tpu as pltpu

BN_EPS = 1e-5
LEAKY_SLOPE = 0.2
LANE = 128  # TPU vreg lane width


def _round_up(n, m):
    return ((n + m - 1) // m) * m


# --------------------------------------------------------------------------
# Kernel
# --------------------------------------------------------------------------
def vae_forward_kernel(x_ref, eps_ref,
                       w1, w2, wmv, w3, w4, w5, vec_ref,
                       recon_ref, muvar_ref):
    # Static sizes derived from the (whole-array) ref shapes.
    h = w1.shape[1]            # hidden_size
    h2 = w2.shape[1]           # hidden_size // 2
    l_half = wmv.shape[1] // 2  # padded latent width (64)
    d_pad = w5.shape[1]        # padded input/recon width (128)

    def linear(a, w_ref, b):
        # bf16 MXU operands, f32 accumulation; bias add in f32.
        return jnp.dot(a.astype(jnp.bfloat16), w_ref[...],
                       preferred_element_type=jnp.float32) + b

    def bn_leaky(hx, gamma, beta):
        # Training-mode BatchNorm1d (biased batch variance, eps=1e-5) fused
        # into per-lane scale/shift with one-pass stats, then LeakyReLU(0.2)
        # as a single maximum.
        inv_n = 1.0 / hx.shape[0]
        mean = jnp.sum(hx, axis=0, keepdims=True) * inv_n
        ex2 = jnp.sum(hx * hx, axis=0, keepdims=True) * inv_n
        var = ex2 - mean * mean
        scale = gamma * jax.lax.rsqrt(var + BN_EPS)
        shift = beta - mean * scale
        y = hx * scale + shift
        return jnp.maximum(y, LEAKY_SLOPE * y)

    x = x_ref[...]  # (B, input_size) — contraction dim needs no lane padding

    # ---- encoder ----
    e1 = bn_leaky(linear(x, w1, vec_ref[0:1, :h]),
                  vec_ref[1:2, :h], vec_ref[2:3, :h])
    e2 = bn_leaky(linear(e1, w2, vec_ref[3:4, :h2]),
                  vec_ref[4:5, :h2], vec_ref[5:6, :h2])

    # ---- fused mu | log_var head: one lane-dense 128-wide slab ----
    muvar = linear(e2, wmv, vec_ref[6:7, :2 * l_half])   # (B, 2*l_half)
    mu = muvar[:, :l_half]
    log_var = muvar[:, l_half:]

    # ---- reparameterize ----
    # Padded latent lanes are irrelevant: the corresponding rows of w3 are 0.
    z = mu + eps_ref[...] * jnp.exp(0.5 * log_var)

    # ---- decoder ----
    d1 = bn_leaky(linear(z, w3, vec_ref[7:8, :h2]),
                  vec_ref[8:9, :h2], vec_ref[9:10, :h2])
    d2 = bn_leaky(linear(d1, w4, vec_ref[10:11, :h]),
                  vec_ref[11:12, :h], vec_ref[12:13, :h])
    logits = linear(d2, w5, vec_ref[13:14, :d_pad])

    # Sigmoid via a single EUP tanh; result exactly in [0, 1].
    recon = 0.5 * jnp.tanh(0.5 * logits) + 0.5

    # Lane-dense full-width stores.
    recon_ref[...] = recon.astype(recon_ref.dtype)
    muvar_ref[...] = muvar.astype(muvar_ref.dtype)


# --------------------------------------------------------------------------
# Parameter construction (PyTorch-equivalent layout) and TPU packing
# --------------------------------------------------------------------------
def _init_linear(key, fan_in, fan_out):
    """PyTorch nn.Linear default init: U(-1/sqrt(fan_in), 1/sqrt(fan_in))."""
    kw, kb = jax.random.split(key)
    bound = 1.0 / jnp.sqrt(float(fan_in))
    w = jax.random.uniform(kw, (fan_in, fan_out), jnp.float32, -bound, bound)
    b = jax.random.uniform(kb, (1, fan_out), jnp.float32, -bound, bound)
    return w, b


def _init_bn(n):
    # BatchNorm1d affine params: gamma=1, beta=0.
    return jnp.ones((1, n), jnp.float32), jnp.zeros((1, n), jnp.float32)


def init_vae_params(key, input_size, latent_size=14, hidden_size=128):
    keys = jax.random.split(key, 7)
    h, h2 = hidden_size, hidden_size // 2
    w1, b1 = _init_linear(keys[0], input_size, h)
    g1, bb1 = _init_bn(h)
    w2, b2 = _init_linear(keys[1], h, h2)
    g2, bb2 = _init_bn(h2)
    wmu, bmu = _init_linear(keys[2], h2, latent_size)
    wvar, bvar = _init_linear(keys[3], h2, latent_size)
    w3, b3 = _init_linear(keys[4], latent_size, h2)
    g3, bb3 = _init_bn(h2)
    w4, b4 = _init_linear(keys[5], h2, h)
    g4, bb4 = _init_bn(h)
    w5, b5 = _init_linear(keys[6], h, input_size)
    return (w1, b1, g1, bb1,
            w2, b2, g2, bb2,
            wmu, bmu, wvar, bvar,
            w3, b3, g3, bb3,
            w4, b4, g4, bb4,
            w5, b5)


def pack_vae_params(params, input_size, latent_size, hidden_size):
    """One-time packing: bf16 weights, fused mu|var head into one 128-lane
    slab, zero-padded narrow dims, and all small vectors in one f32 slab."""
    (w1, b1, g1, bb1, w2, b2, g2, bb2, wmu, bmu, wvar, bvar,
     w3, b3, g3, bb3, w4, b4, g4, bb4, w5, b5) = params
    h, h2 = hidden_size, hidden_size // 2
    d_pad = _round_up(input_size, LANE)
    l_half = _round_up(latent_size, LANE // 2)   # 64-lane halves -> 128 slab
    bf16 = jnp.bfloat16

    # Weights (MXU operands) in bf16. The contraction dims need no padding.
    w1p = w1.astype(bf16)                                         # (in, h)
    w2p = w2.astype(bf16)                                         # (h, h2)

    wmv = jnp.zeros((h2, 2 * l_half), jnp.float32)
    wmv = wmv.at[:, :latent_size].set(wmu)
    wmv = wmv.at[:, l_half:l_half + latent_size].set(wvar)
    wmvp = wmv.astype(bf16)                                       # (h2, 128)

    w3p = (jnp.zeros((l_half, h2), jnp.float32)
           .at[:latent_size, :].set(w3).astype(bf16))             # (64, h2)
    w4p = w4.astype(bf16)                                         # (h2, h)
    w5p = (jnp.zeros((h, d_pad), jnp.float32)
           .at[:, :input_size].set(w5).astype(bf16))              # (h, 128)

    # All 14 bias / gamma / beta vectors in one (16, W) f32 slab -> 1 DMA.
    W = _round_up(max(h, 2 * l_half, d_pad, LANE), LANE)
    vec = jnp.zeros((16, W), jnp.float32)
    rows = [(0, b1), (1, g1), (2, bb1),
            (3, b2), (4, g2), (5, bb2),
            (7, b3), (8, g3), (9, bb3),
            (10, b4), (11, g4), (12, bb4)]
    for r, v in rows:
        vec = vec.at[r, :v.shape[1]].set(v[0])
    vec = vec.at[6, :latent_size].set(bmu[0])
    vec = vec.at[6, l_half:l_half + latent_size].set(bvar[0])
    vec = vec.at[13, :input_size].set(b5[0])

    return (w1p, w2p, wmvp, w3p, w4p, w5p, vec)


# --------------------------------------------------------------------------
# Wrapper
# --------------------------------------------------------------------------
def vae_forward(x, eps_pad, packed_params, latent_size):
    """x: (B, input_size) unpadded. eps_pad: (B, l_half) standard-normal noise
    (only the first latent_size columns are used)."""
    batch, input_size = x.shape
    w1p, w2p, wmvp, w3p, w4p, w5p, vec = packed_params
    l_half = wmvp.shape[1] // 2
    d_pad = w5p.shape[1]
    assert eps_pad.shape == (batch, l_half)

    # Whole batch stays VMEM-resident: training-mode BatchNorm needs
    # whole-batch statistics. Footprint at B=2048 is ~10-12 MB, inside the
    # 16 MiB limit below (v7x scoped VMEM is 32 MiB, physical 64 MiB).
    assert batch <= 2048, "batch too large for whole-batch-resident BN kernel"
    # TODO(synk): batch grid + two-pass BN (or core_map + CMEM stat reduce)
    # to use v7x's second TensorCore and lift the batch cap.

    vmem = pl.BlockSpec(memory_space=pltpu.MemorySpace.VMEM)
    out_shape = (
        jax.ShapeDtypeStruct((batch, d_pad), jnp.float32),       # recon (padded)
        jax.ShapeDtypeStruct((batch, 2 * l_half), jnp.float32),  # [mu | logvar]
    )

    recon_p, muvar = pl.pallas_call(
        vae_forward_kernel,
        out_shape=out_shape,
        in_specs=[vmem] * (2 + len(packed_params)),
        out_specs=(vmem, vmem),
        compiler_params=pltpu.CompilerParams(
            vmem_limit_bytes=16 * 1024 * 1024,
        ),
    )(x, eps_pad, *packed_params)

    # Module-faithful output shapes; downstream could consume padded slabs.
    recon = recon_p[:, :input_size]
    mu = muvar[:, :latent_size]
    log_var = muvar[:, l_half:l_half + latent_size]
    return recon, mu, log_var


# --------------------------------------------------------------------------
# Pure-JAX reference (unpadded f32 params) for correctness checking
# --------------------------------------------------------------------------
def vae_forward_ref(x, eps, params):
    (w1, b1, g1, bb1, w2, b2, g2, bb2, wmu, bmu, wvar, bvar,
     w3, b3, g3, bb3, w4, b4, g4, bb4, w5, b5) = params

    def bn(h, g, b):
        m = jnp.mean(h, axis=0, keepdims=True)
        v = jnp.mean((h - m) ** 2, axis=0, keepdims=True)
        return (h - m) / jnp.sqrt(v + BN_EPS) * g + b

    def lrelu(h):
        return jnp.where(h > 0, h, LEAKY_SLOPE * h)

    def lin(a, w, b):
        return jnp.dot(a, w, preferred_element_type=jnp.float32) + b

    h = lrelu(bn(lin(x, w1, b1), g1, bb1))
    h = lrelu(bn(lin(h, w2, b2), g2, bb2))
    mu = lin(h, wmu, bmu)
    log_var = lin(h, wvar, bvar)
    z = mu + eps * jnp.exp(0.5 * log_var)
    d = lrelu(bn(lin(z, w3, b3), g3, bb3))
    d = lrelu(bn(lin(d, w4, b4), g4, bb4))
    recon = jax.nn.sigmoid(lin(d, w5, b5))
    return recon, mu, log_var


# --------------------------------------------------------------------------
if __name__ == "__main__":
    INPUT_SIZE = 32
    LATENT_SIZE = 14
    HIDDEN_SIZE = 128
    BATCH = 16

    root = jax.random.PRNGKey(0)
    k_params, k_x, k_eps = jax.random.split(root, 3)

    params = init_vae_params(k_params, INPUT_SIZE, LATENT_SIZE, HIDDEN_SIZE)
    packed = pack_vae_params(params, INPUT_SIZE, LATENT_SIZE, HIDDEN_SIZE)
    L_HALF = packed[2].shape[1] // 2   # 64

    x = jax.random.uniform(k_x, (BATCH, INPUT_SIZE), jnp.float32)
    # Draw the noise slab directly at the padded width; only the first
    # LATENT_SIZE columns are ever used (padded decoder rows are zero), so
    # there is no wrapper-side pad HBM pass.
    eps_pad = jax.random.normal(k_eps, (BATCH, L_HALF), jnp.float32)

    recon, mu, log_var = jax.block_until_ready(
        vae_forward(x, eps_pad, packed, LATENT_SIZE))
    recon_r, mu_r, log_var_r = vae_forward_ref(
        x, eps_pad[:, :LATENT_SIZE], params)

    assert recon.shape == (BATCH, INPUT_SIZE)
    assert mu.shape == (BATCH, LATENT_SIZE)
    assert log_var.shape == (BATCH, LATENT_SIZE)
    assert bool(jnp.all(jnp.isfinite(recon)))
    assert bool(jnp.all(jnp.isfinite(mu)))
    assert bool(jnp.all(jnp.isfinite(log_var)))
    # tanh-form sigmoid keeps recon in [0, 1] (tiny slack for EUP approx).
    assert bool(jnp.all((recon >= -1e-5) & (recon <= 1.0 + 1e-5)))
    # Tolerance covers the bf16 MXU operand path (f32 accumulation).
    assert bool(jnp.allclose(recon, recon_r, atol=3e-2)), "recon mismatch"
    assert bool(jnp.allclose(mu, mu_r, atol=3e-2)), "mu mismatch"
    assert bool(jnp.allclose(log_var, log_var_r, atol=3e-2)), "log_var mismatch"

    print("KERNEL_OK")
</pallas_src>

<mosaic_0001>
module attributes {stable_mosaic.version = 11 : i64} {
  func.func @vae_forward_kernel(%arg0: memref<16x32xf32, #tpu.memory_space<vmem>>, %arg1: memref<16x64xf32, #tpu.memory_space<vmem>>, %arg2: memref<32x128xbf16, #tpu.memory_space<vmem>>, %arg3: memref<128x64xbf16, #tpu.memory_space<vmem>>, %arg4: memref<64x128xbf16, #tpu.memory_space<vmem>>, %arg5: memref<64x64xbf16, #tpu.memory_space<vmem>>, %arg6: memref<64x128xbf16, #tpu.memory_space<vmem>>, %arg7: memref<128x128xbf16, #tpu.memory_space<vmem>>, %arg8: memref<16x128xf32, #tpu.memory_space<vmem>>, %arg9: memref<16x128xf32, #tpu.memory_space<vmem>>, %arg10: memref<16x128xf32, #tpu.memory_space<vmem>>) attributes {dimension_semantics = [], scalar_prefetch = 0 : i64, scratch_operands = 0 : i64, tpu.core_type = #tpu.core_type<tc>} {
    %c0 = arith.constant 0 : index
    %c0_0 = arith.constant 0 : index
    %0 = vector.load %arg0[%c0, %c0_0] : memref<16x32xf32, #tpu.memory_space<vmem>>, vector<16x32xf32>
    %c0_1 = arith.constant 0 : index
    %c0_2 = arith.constant 0 : index
    %1 = vector.load %arg8[%c0_1, %c0_2] : memref<16x128xf32, #tpu.memory_space<vmem>>, vector<1x128xf32>
    %2 = arith.truncf %0 : vector<16x32xf32> to vector<16x32xbf16>
    %c0_3 = arith.constant 0 : index
    %c0_4 = arith.constant 0 : index
    %3 = vector.load %arg2[%c0_3, %c0_4] : memref<32x128xbf16, #tpu.memory_space<vmem>>, vector<32x128xbf16>
    %cst = arith.constant dense<0.000000e+00> : vector<16x128xf32>
    %4 = tpu.matmul %2, %3, %cst {dimension_numbers = #tpu.dot_dimension_numbers<[1], [0], [0], [1], [0, 0, 1, 1], [], []>} : vector<16x32xbf16>, vector<32x128xbf16>, vector<16x128xf32> -> vector<16x128xf32>
    %5 = vector.broadcast %1 : vector<1x128xf32> to vector<16x128xf32>
    %6 = arith.addf %4, %5 : vector<16x128xf32>
    %c1 = arith.constant 1 : index
    %c0_5 = arith.constant 0 : index
    %7 = vector.load %arg8[%c1, %c0_5] : memref<16x128xf32, #tpu.memory_space<vmem>>, vector<1x128xf32>
    %c2 = arith.constant 2 : index
    %c0_6 = arith.constant 0 : index
    %8 = vector.load %arg8[%c2, %c0_6] : memref<16x128xf32, #tpu.memory_space<vmem>>, vector<1x128xf32>
    %cst_7 = arith.constant dense<0.000000e+00> : vector<128xf32>
    %9 = vector.multi_reduction <add>, %6, %cst_7 [0] : vector<16x128xf32> to vector<128xf32>
    %10 = vector.shape_cast %9 : vector<128xf32> to vector<1x128xf32>
    %cst_8 = arith.constant 6.250000e-02 : f32
    %11 = vector.broadcast %cst_8 : f32 to vector<1x128xf32>
    %12 = arith.mulf %10, %11 : vector<1x128xf32>
    %13 = arith.mulf %6, %6 : vector<16x128xf32>
    %cst_9 = arith.constant dense<0.000000e+00> : vector<128xf32>
    %14 = vector.multi_reduction <add>, %13, %cst_9 [0] : vector<16x128xf32> to vector<128xf32>
    %15 = vector.shape_cast %14 : vector<128xf32> to vector<1x128xf32>
    %cst_10 = arith.constant 6.250000e-02 : f32
    %16 = vector.broadcast %cst_10 : f32 to vector<1x128xf32>
    %17 = arith.mulf %15, %16 : vector<1x128xf32>
    %18 = arith.mulf %12, %12 : vector<1x128xf32>
    %19 = arith.subf %17, %18 : vector<1x128xf32>
    %cst_11 = arith.constant 9.99999974E-6 : f32
    %20 = vector.broadcast %cst_11 : f32 to vector<1x128xf32>
    %21 = arith.addf %19, %20 : vector<1x128xf32>
    %22 = math.rsqrt %21 : vector<1x128xf32>
    %23 = arith.mulf %7, %22 : vector<1x128xf32>
    %24 = arith.mulf %12, %23 : vector<1x128xf32>
    %25 = arith.subf %8, %24 : vector<1x128xf32>
    %26 = vector.broadcast %23 : vector<1x128xf32> to vector<16x128xf32>
    %27 = arith.mulf %6, %26 : vector<16x128xf32>
    %28 = vector.broadcast %25 : vector<1x128xf32> to vector<16x128xf32>
    %29 = arith.addf %27, %28 : vector<16x128xf32>
    %cst_12 = arith.constant 2.000000e-01 : f32
    %30 = vector.broadcast %cst_12 : f32 to vector<16x128xf32>
    %31 = arith.mulf %30, %29 : vector<16x128xf32>
    %32 = arith.maximumf %29, %31 : vector<16x128xf32>
    %c3 = arith.constant 3 : index
    %c0_13 = arith.constant 0 : index
    %33 = vector.load %arg8[%c3, %c0_13] : memref<16x128xf32, #tpu.memory_space<vmem>>, vector<1x64xf32>
    %34 = arith.truncf %32 : vector<16x128xf32> to vector<16x128xbf16>
    %c0_14 = arith.constant 0 : index
    %c0_15 = arith.constant 0 : index
    %35 = vector.load %arg3[%c0_14, %c0_15] : memref<128x64xbf16, #tpu.memory_space<vmem>>, vector<128x64xbf16>
    %cst_16 = arith.constant dense<0.000000e+00> : vector<16x64xf32>
    %36 = tpu.matmul %34, %35, %cst_16 {dimension_numbers = #tpu.dot_dimension_numbers<[1], [0], [0], [1], [0, 0, 1, 1], [], []>} : vector<16x128xbf16>, vector<128x64xbf16>, vector<16x64xf32> -> vector<16x64xf32>
    %37 = vector.broadcast %33 : vector<1x64xf32> to vector<16x64xf32>
    %38 = arith.addf %36, %37 : vector<16x64xf32>
    %c4 = arith.constant 4 : index
    %c0_17 = arith.constant 0 : index
    %39 = vector.load %arg8[%c4, %c0_17] : memref<16x128xf32, #tpu.memory_space<vmem>>, vector<1x64xf32>
    %c5 = arith.constant 5 : index
    %c0_18 = arith.constant 0 : index
    %40 = vector.load %arg8[%c5, %c0_18] : memref<16x128xf32, #tpu.memory_space<vmem>>, vector<1x64xf32>
    %cst_19 = arith.constant dense<0.000000e+00> : vector<64xf32>
    %41 = vector.multi_reduction <add>, %38, %cst_19 [0] : vector<16x64xf32> to vector<64xf32>
    %42 = vector.shape_cast %41 : vector<64xf32> to vector<1x64xf32>
    %cst_20 = arith.constant 6.250000e-02 : f32
    %43 = vector.broadcast %cst_20 : f32 to vector<1x64xf32>
    %44 = arith.mulf %42, %43 : vector<1x64xf32>
    %45 = arith.mulf %38, %38 : vector<16x64xf32>
    %cst_21 = arith.constant dense<0.000000e+00> : vector<64xf32>
    %46 = vector.multi_reduction <add>, %45, %cst_21 [0] : vector<16x64xf32> to vector<64xf32>
    %47 = vector.shape_cast %46 : vector<64xf32> to vector<1x64xf32>
    %cst_22 = arith.constant 6.250000e-02 : f32
    %48 = vector.broadcast %cst_22 : f32 to vector<1x64xf32>
    %49 = arith.mulf %47, %48 : vector<1x64xf32>
    %50 = arith.mulf %44, %44 : vector<1x64xf32>
    %51 = arith.subf %49, %50 : vector<1x64xf32>
    %cst_23 = arith.constant 9.99999974E-6 : f32
    %52 = vector.broadcast %cst_23 : f32 to vector<1x64xf32>
    %53 = arith.addf %51, %52 : vector<1x64xf32>
    %54 = math.rsqrt %53 : vector<1x64xf32>
    %55 = arith.mulf %39, %54 : vector<1x64xf32>
    %56 = arith.mulf %44, %55 : vector<1x64xf32>
    %57 = arith.subf %40, %56 : vector<1x64xf32>
    %58 = vector.broadcast %55 : vector<1x64xf32> to vector<16x64xf32>
    %59 = arith.mulf %38, %58 : vector<16x64xf32>
    %60 = vector.broadcast %57 : vector<1x64xf32> to vector<16x64xf32>
    %61 = arith.addf %59, %60 : vector<16x64xf32>
    %cst_24 = arith.constant 2.000000e-01 : f32
    %62 = vector.broadcast %cst_24 : f32 to vector<16x64xf32>
    %63 = arith.mulf %62, %61 : vector<16x64xf32>
    %64 = arith.maximumf %61, %63 : vector<16x64xf32>
    %c6 = arith.constant 6 : index
    %c0_25 = arith.constant 0 : index
    %65 = vector.load %arg8[%c6, %c0_25] : memref<16x128xf32, #tpu.memory_space<vmem>>, vector<1x128xf32>
    %66 = arith.truncf %64 : vector<16x64xf32> to vector<16x64xbf16>
    %c0_26 = arith.constant 0 : index
    %c0_27 = arith.constant 0 : index
    %67 = vector.load %arg4[%c0_26, %c0_27] : memref<64x128xbf16, #tpu.memory_space<vmem>>, vector<64x128xbf16>
    %cst_28 = arith.constant dense<0.000000e+00> : vector<16x128xf32>
    %68 = tpu.matmul %66, %67, %cst_28 {dimension_numbers = #tpu.dot_dimension_numbers<[1], [0], [0], [1], [0, 0, 1, 1], [], []>} : vector<16x64xbf16>, vector<64x128xbf16>, vector<16x128xf32> -> vector<16x128xf32>
    %69 = vector.broadcast %65 : vector<1x128xf32> to vector<16x128xf32>
    %70 = arith.addf %68, %69 : vector<16x128xf32>
    %71 = vector.extract_strided_slice %70 {offsets = [0, 0], sizes = [16, 64], strides = [1, 1]} : vector<16x128xf32> to vector<16x64xf32>
    %72 = vector.extract_strided_slice %70 {offsets = [0, 64], sizes = [16, 64], strides = [1, 1]} : vector<16x128xf32> to vector<16x64xf32>
    %c0_29 = arith.constant 0 : index
    %c0_30 = arith.constant 0 : index
    %73 = vector.load %arg1[%c0_29, %c0_30] : memref<16x64xf32, #tpu.memory_space<vmem>>, vector<16x64xf32>
    %cst_31 = arith.constant 5.000000e-01 : f32
    %74 = vector.broadcast %cst_31 : f32 to vector<16x64xf32>
    %75 = arith.mulf %74, %72 : vector<16x64xf32>
    %76 = math.exp %75 : vector<16x64xf32>
    %77 = arith.mulf %73, %76 : vector<16x64xf32>
    %78 = arith.addf %71, %77 : vector<16x64xf32>
    %c7 = arith.constant 7 : index
    %c0_32 = arith.constant 0 : index
    %79 = vector.load %arg8[%c7, %c0_32] : memref<16x128xf32, #tpu.memory_space<vmem>>, vector<1x64xf32>
    %80 = arith.truncf %78 : vector<16x64xf32> to vector<16x64xbf16>
    %c0_33 = arith.constant 0 : index
    %c0_34 = arith.constant 0 : index
    %81 = vector.load %arg5[%c0_33, %c0_34] : memref<64x64xbf16, #tpu.memory_space<vmem>>, vector<64x64xbf16>
    %cst_35 = arith.constant dense<0.000000e+00> : vector<16x64xf32>
    %82 = tpu.matmul %80, %81, %cst_35 {dimension_numbers = #tpu.dot_dimension_numbers<[1], [0], [0], [1], [0, 0, 1, 1], [], []>} : vector<16x64xbf16>, vector<64x64xbf16>, vector<16x64xf32> -> vector<16x64xf32>
    %83 = vector.broadcast %79 : vector<1x64xf32> to vector<16x64xf32>
    %84 = arith.addf %82, %83 : vector<16x64xf32>
    %c8 = arith.constant 8 : index
    %c0_36 = arith.constant 0 : index
    %85 = vector.load %arg8[%c8, %c0_36] : memref<16x128xf32, #tpu.memory_space<vmem>>, vector<1x64xf32>
    %c9 = arith.constant 9 : index
    %c0_37 = arith.constant 0 : index
    %86 = vector.load %arg8[%c9, %c0_37] : memref<16x128xf32, #tpu.memory_space<vmem>>, vector<1x64xf32>
    %cst_38 = arith.constant dense<0.000000e+00> : vector<64xf32>
    %87 = vector.multi_reduction <add>, %84, %cst_38 [0] : vector<16x64xf32> to vector<64xf32>
    %88 = vector.shape_cast %87 : vector<64xf32> to vector<1x64xf32>
    %cst_39 = arith.constant 6.250000e-02 : f32
    %89 = vector.broadcast %cst_39 : f32 to vector<1x64xf32>
    %90 = arith.mulf %88, %89 : vector<1x64xf32>
    %91 = arith.mulf %84, %84 : vector<16x64xf32>
    %cst_40 = arith.constant dense<0.000000e+00> : vector<64xf32>
    %92 = vector.multi_reduction <add>, %91, %cst_40 [0] : vector<16x64xf32> to vector<64xf32>
    %93 = vector.shape_cast %92 : vector<64xf32> to vector<1x64xf32>
    %cst_41 = arith.constant 6.250000e-02 : f32
    %94 = vector.broadcast %cst_41 : f32 to vector<1x64xf32>
    %95 = arith.mulf %93, %94 : vector<1x64xf32>
    %96 = arith.mulf %90, %90 : vector<1x64xf32>
    %97 = arith.subf %95, %96 : vector<1x64xf32>
    %cst_42 = arith.constant 9.99999974E-6 : f32
    %98 = vector.broadcast %cst_42 : f32 to vector<1x64xf32>
    %99 = arith.addf %97, %98 : vector<1x64xf32>
    %100 = math.rsqrt %99 : vector<1x64xf32>
    %101 = arith.mulf %85, %100 : vector<1x64xf32>
    %102 = arith.mulf %90, %101 : vector<1x64xf32>
    %103 = arith.subf %86, %102 : vector<1x64xf32>
    %104 = vector.broadcast %101 : vector<1x64xf32> to vector<16x64xf32>
    %105 = arith.mulf %84, %104 : vector<16x64xf32>
    %106 = vector.broadcast %103 : vector<1x64xf32> to vector<16x64xf32>
    %107 = arith.addf %105, %106 : vector<16x64xf32>
    %cst_43 = arith.constant 2.000000e-01 : f32
    %108 = vector.broadcast %cst_43 : f32 to vector<16x64xf32>
    %109 = arith.mulf %108, %107 : vector<16x64xf32>
    %110 = arith.maximumf %107, %109 : vector<16x64xf32>
    %c10 = arith.constant 10 : index
    %c0_44 = arith.constant 0 : index
    %111 = vector.load %arg8[%c10, %c0_44] : memref<16x128xf32, #tpu.memory_space<vmem>>, vector<1x128xf32>
    %112 = arith.truncf %110 : vector<16x64xf32> to vector<16x64xbf16>
    %c0_45 = arith.constant 0 : index
    %c0_46 = arith.constant 0 : index
    %113 = vector.load %arg6[%c0_45, %c0_46] : memref<64x128xbf16, #tpu.memory_space<vmem>>, vector<64x128xbf16>
    %cst_47 = arith.constant dense<0.000000e+00> : vector<16x128xf32>
    %114 = tpu.matmul %112, %113, %cst_47 {dimension_numbers = #tpu.dot_dimension_numbers<[1], [0], [0], [1], [0, 0, 1, 1], [], []>} : vector<16x64xbf16>, vector<64x128xbf16>, vector<16x128xf32> -> vector<16x128xf32>
    %115 = vector.broadcast %111 : vector<1x128xf32> to vector<16x128xf32>
    %116 = arith.addf %114, %115 : vector<16x128xf32>
    %c11 = arith.constant 11 : index
    %c0_48 = arith.constant 0 : index
    %117 = vector.load %arg8[%c11, %c0_48] : memref<16x128xf32, #tpu.memory_space<vmem>>, vector<1x128xf32>
    %c12 = arith.constant 12 : index
    %c0_49 = arith.constant 0 : index
    %118 = vector.load %arg8[%c12, %c0_49] : memref<16x128xf32, #tpu.memory_space<vmem>>, vector<1x128xf32>
    %cst_50 = arith.constant dense<0.000000e+00> : vector<128xf32>
    %119 = vector.multi_reduction <add>, %116, %cst_50 [0] : vector<16x128xf32> to vector<128xf32>
    %120 = vector.shape_cast %119 : vector<128xf32> to vector<1x128xf32>
    %cst_51 = arith.constant 6.250000e-02 : f32
    %121 = vector.broadcast %cst_51 : f32 to vector<1x128xf32>
    %122 = arith.mulf %120, %121 : vector<1x128xf32>
    %123 = arith.mulf %116, %116 : vector<16x128xf32>
    %cst_52 = arith.constant dense<0.000000e+00> : vector<128xf32>
    %124 = vector.multi_reduction <add>, %123, %cst_52 [0] : vector<16x128xf32> to vector<128xf32>
    %125 = vector.shape_cast %124 : vector<128xf32> to vector<1x128xf32>
    %cst_53 = arith.constant 6.250000e-02 : f32
    %126 = vector.broadcast %cst_53 : f32 to vector<1x128xf32>
    %127 = arith.mulf %125, %126 : vector<1x128xf32>
    %128 = arith.mulf %122, %122 : vector<1x128xf32>
    %129 = arith.subf %127, %128 : vector<1x128xf32>
    %cst_54 = arith.constant 9.99999974E-6 : f32
    %130 = vector.broadcast %cst_54 : f32 to vector<1x128xf32>
    %131 = arith.addf %129, %130 : vector<1x128xf32>
    %132 = math.rsqrt %131 : vector<1x128xf32>
    %133 = arith.mulf %117, %132 : vector<1x128xf32>
    %134 = arith.mulf %122, %133 : vector<1x128xf32>
    %135 = arith.subf %118, %134 : vector<1x128xf32>
    %136 = vector.broadcast %133 : vector<1x128xf32> to vector<16x128xf32>
    %137 = arith.mulf %116, %136 : vector<16x128xf32>
    %138 = vector.broadcast %135 : vector<1x128xf32> to vector<16x128xf32>
    %139 = arith.addf %137, %138 : vector<16x128xf32>
    %cst_55 = arith.constant 2.000000e-01 : f32
    %140 = vector.broadcast %cst_55 : f32 to vector<16x128xf32>
    %141 = arith.mulf %140, %139 : vector<16x128xf32>
    %142 = arith.maximumf %139, %141 : vector<16x128xf32>
    %c13 = arith.constant 13 : index
    %c0_56 = arith.constant 0 : index
    %143 = vector.load %arg8[%c13, %c0_56] : memref<16x128xf32, #tpu.memory_space<vmem>>, vector<1x128xf32>
    %144 = arith.truncf %142 : vector<16x128xf32> to vector<16x128xbf16>
    %c0_57 = arith.constant 0 : index
    %c0_58 = arith.constant 0 : index
    %145 = vector.load %arg7[%c0_57, %c0_58] : memref<128x128xbf16, #tpu.memory_space<vmem>>, vector<128x128xbf16>
    %cst_59 = arith.constant dense<0.000000e+00> : vector<16x128xf32>
    %146 = tpu.matmul %144, %145, %cst_59 {dimension_numbers = #tpu.dot_dimension_numbers<[1], [0], [0], [1], [0, 0, 1, 1], [], []>} : vector<16x128xbf16>, vector<128x128xbf16>, vector<16x128xf32> -> vector<16x128xf32>
    %147 = vector.broadcast %143 : vector<1x128xf32> to vector<16x128xf32>
    %148 = arith.addf %146, %147 : vector<16x128xf32>
    %cst_60 = arith.constant 5.000000e-01 : f32
    %149 = vector.broadcast %cst_60 : f32 to vector<16x128xf32>
    %150 = arith.mulf %149, %148 : vector<16x128xf32>
    %151 = math.tanh %150 : vector<16x128xf32>
    %cst_61 = arith.constant 5.000000e-01 : f32
    %152 = vector.broadcast %cst_61 : f32 to vector<16x128xf32>
    %153 = arith.mulf %152, %151 : vector<16x128xf32>
    %cst_62 = arith.constant 5.000000e-01 : f32
    %154 = vector.broadcast %cst_62 : f32 to vector<16x128xf32>
    %155 = arith.addf %153, %154 : vector<16x128xf32>
    %c0_63 = arith.constant 0 : index
    %c0_64 = arith.constant 0 : index
    %156 = vector.load %arg9[%c0_63, %c0_64] : memref<16x128xf32, #tpu.memory_space<vmem>>, vector<16x128xf32>
    tpu.vector_store %arg9[%c0_63, %c0_64], %155 {strides = array<i32>} : memref<16x128xf32, #tpu.memory_space<vmem>>, vector<16x128xf32>,
    %c0_65 = arith.constant 0 : index
    %c0_66 = arith.constant 0 : index
    %157 = vector.load %arg10[%c0_65, %c0_66] : memref<16x128xf32, #tpu.memory_space<vmem>>, vector<16x128xf32>
    tpu.vector_store %arg10[%c0_65, %c0_66], %70 {strides = array<i32>} : memref<16x128xf32, #tpu.memory_space<vmem>>, vector<16x128xf32>,
    return
  }
}

</mosaic_0001>

<llo_original>
// kernel: tpu_custom_call.1
$region0: #{tpu_custom_call.1}
  #allocation0 [shape = 'u32[]', space=smem, size = 0x4, offset = 0x4, fixed_abs, tag = 'smem constant byte address 0x4 - core index']
  #allocation1 [shape = 'u32[144,128]{1,0:T(1,128)}', space=vmem, size = 0x12000, scoped, tag = 'internal scratch']
  %s0 = inlined_call_operand.hbm [shape: f32[16,32], index: 0, kind: input, shape index: {}]
  %s1 = inlined_call_operand.hbm [shape: f32[16,64], index: 1, kind: input, shape index: {}]
  %s2 = inlined_call_operand.hbm [shape: bf16[32,128], index: 2, kind: input, shape index: {}]
  %s3 = inlined_call_operand.vmem [shape: bf16[128,64], index: 3, kind: input, shape index: {}]
  %s4 = inlined_call_operand.vmem [shape: bf16[64,128], index: 4, kind: input, shape index: {}]
  %s5 = inlined_call_operand.hbm [shape: bf16[64,64], index: 5, kind: input, shape index: {}]
  %s6 = inlined_call_operand.hbm [shape: bf16[64,128], index: 6, kind: input, shape index: {}]
  %s7 = inlined_call_operand.vmem [shape: bf16[128,128], index: 7, kind: input, shape index: {}]
  %s8 = inlined_call_operand.hbm [shape: f32[16,128], index: 8, kind: input, shape index: {}]
  %s9 = inlined_call_operand.hbm [shape: f32[16,128], index: 9, kind: output, shape index: {0}]
  %s10 = inlined_call_operand.hbm [shape: f32[16,128], index: 10, kind: output, shape index: {1}]
  %11 = xla_tuple %s9, %s10
  %s12 = sld [smem:[#allocation0]]
  $region78: #{tpu_custom_call.1} parent=0
    _
  %s14 = ssub.s32 1, %s12
  %s15 = scalar_select 0, %s14, %s12
  $region1: #{tpu_custom_call.1} parent=0
    #allocation2 [shape = 'u8[8192]{0}', space=vmem, size = 0x2000, scoped, tag = 'input window, operand 0, single buffered']
    #allocation3 [shape = 's32[1]{0}', space=sflag, size = 0x4, scoped, tag = 'scoped memory for tpu_custom_call.1']
    #allocation4 [shape = 's32[1]{0}', space=sflag, size = 0x4, scoped, tag = 'scoped memory for tpu_custom_call.1']
    #allocation5 [shape = 'u8[8192]{0}', space=vmem, size = 0x2000, scoped, tag = 'input window, operand 1, single buffered']
    #allocation6 [shape = 's32[1]{0}', space=sflag, size = 0x4, scoped, tag = 'scoped memory for tpu_custom_call.1']
    #allocation7 [shape = 'u8[8192]{0}', space=vmem, size = 0x2000, scoped, tag = 'input window, operand 2, single buffered']
    #allocation8 [shape = 'u8[16384]{0}', space=vmem, size = 0x4000, scoped, tag = 'input window, operand 5, single buffered']
    #allocation9 [shape = 's32[1]{0}', space=sflag, size = 0x4, scoped, tag = 'scoped memory for tpu_custom_call.1']
    #allocation10 [shape = 'u8[16384]{0}', space=vmem, size = 0x4000, scoped, tag = 'input window, operand 6, single buffered']
    #allocation11 [shape = 'u8[8192]{0}', space=vmem, size = 0x2000, scoped, tag = 'input window, operand 8, single buffered']
    #allocation12 [shape = 's32[1]{0}', space=sflag, size = 0x4, scoped, tag = 'scoped memory for tpu_custom_call.1']
    #allocation13 [shape = 'u8[8192]{0}', space=vmem, size = 0x2000, scoped, tag = 'output window, operand 0, single buffered']
    #allocation14 [shape = 'u8[8192]{0}', space=vmem, size = 0x2000, scoped, tag = 'output window, operand 1, single buffered']
    #allocation15 [shape = 's32[1]{0}', space=sflag, size = 0x4, scoped, tag = 'scoped memory for tpu_custom_call.1']
    %16 = vsyncpa [#allocation3], 0
    %17 = vsyncpa [#allocation6], 0
    %18 = vsyncpa [#allocation9], 0
    %19 = vsyncpa [#allocation12], 0
    %20 = vsyncpa [#allocation4], 0
    %21 = vsyncpa [#allocation15], 0
    // Predicated region
    $region2: #{tpu_custom_call.1} parent=1 // pred_check
      _
    $region3: #{tpu_custom_call.1} parent=1 // pred_check_branch
      %23 = sbr.rel (0) target = $region5
    $region4: #{tpu_custom_call.1} parent=1 // pred_region
      %s25 = ssub.s32 256, 256
      %26 = vsyncadd [#allocation3], %s25
      %s27 = sshll.u32 [#allocation2], 4
      %s28 = int_to_ptr.vmem [resolvable:$true] %s27
      %33 = dma.hbm_to_vmem [thread:$0]  %s0, 256, %s28, [#allocation3], 128, 128, 8
    $region5: #{tpu_custom_call.1} parent=1 // pred_fallthru
      _
    // Predicated region
    $region6: #{tpu_custom_call.1} parent=1 // pred_check
      _
    $region7: #{tpu_custom_call.1} parent=1 // pred_check_branch
      %35 = sbr.rel (0) target = $region9
    $region8: #{tpu_custom_call.1} parent=1 // pred_region
      %s37 = ssub.s32 256, 256
      %38 = vsyncadd [#allocation6], %s37
      %s39 = sshll.u32 [#allocation5], 4
      %s40 = int_to_ptr.vmem [resolvable:$true] %s39
      %45 = dma.hbm_to_vmem [thread:$0]  %s1, 256, %s40, [#allocation6], 128, 128, 8
    $region9: #{tpu_custom_call.1} parent=1 // pred_fallthru
      _
    // Predicated region
    $region10: #{tpu_custom_call.1} parent=1 // pred_check
      _
    $region11: #{tpu_custom_call.1} parent=1 // pred_check_branch
      %47 = sbr.rel (0) target = $region13
    $region12: #{tpu_custom_call.1} parent=1 // pred_region
      %s49 = ssub.s32 256, 256
      %50 = vsyncadd [#allocation6], %s49
      %s51 = sshll.u32 [#allocation7], 4
      %s52 = int_to_ptr.vmem [resolvable:$true] %s51
      %57 = dma.hbm_to_vmem [thread:$0]  %s2, 256, %s52, [#allocation6], 64, 64, 4
    $region13: #{tpu_custom_call.1} parent=1 // pred_fallthru
      _
    // Predicated region
    $region14: #{tpu_custom_call.1} parent=1 // pred_check
      _
    $region15: #{tpu_custom_call.1} parent=1 // pred_check_branch
      %59 = sbr.rel (0) target = $region17
    $region16: #{tpu_custom_call.1} parent=1 // pred_region
      _
    $region17: #{tpu_custom_call.1} parent=1 // pred_fallthru
      _
    // Predicated region
    $region18: #{tpu_custom_call.1} parent=1 // pred_check
      _
    $region19: #{tpu_custom_call.1} parent=1 // pred_check_branch
      %61 = sbr.rel (0) target = $region21
    $region20: #{tpu_custom_call.1} parent=1 // pred_region
      _
    $region21: #{tpu_custom_call.1} parent=1 // pred_fallthru
      _
    // Predicated region
    $region22: #{tpu_custom_call.1} parent=1 // pred_check
      _
    $region23: #{tpu_custom_call.1} parent=1 // pred_check_branch
      %63 = sbr.rel (0) target = $region25
    $region24: #{tpu_custom_call.1} parent=1 // pred_region
      %s65 = ssub.s32 512, 512
      %66 = vsyncadd [#allocation9], %s65
      %s67 = sshll.u32 [#allocation8], 4
      %s68 = int_to_ptr.vmem [resolvable:$true] %s67
      %73 = dma.hbm_to_vmem [thread:$0]  %s5, 512, %s68, [#allocation9], 64, 64, 4
    $region25: #{tpu_custom_call.1} parent=1 // pred_fallthru
      _
    // Predicated region
    $region26: #{tpu_custom_call.1} parent=1 // pred_check
      _
    $region27: #{tpu_custom_call.1} parent=1 // pred_check_branch
      %75 = sbr.rel (0) target = $region29
    $region28: #{tpu_custom_call.1} parent=1 // pred_region
      %s77 = ssub.s32 512, 512
      %78 = vsyncadd [#allocation9], %s77
      %s79 = sshll.u32 [#allocation10], 4
      %s80 = int_to_ptr.vmem [resolvable:$true] %s79
      %85 = dma.hbm_to_vmem [thread:$0]  %s6, 512, %s80, [#allocation9], 64, 64, 4
    $region29: #{tpu_custom_call.1} parent=1 // pred_fallthru
      _
    // Predicated region
    $region30: #{tpu_custom_call.1} parent=1 // pred_check
      _
    $region31: #{tpu_custom_call.1} parent=1 // pred_check_branch
      %87 = sbr.rel (0) target = $region33
    $region32: #{tpu_custom_call.1} parent=1 // pred_region
      _
    $region33: #{tpu_custom_call.1} parent=1 // pred_fallthru
      _
    // Predicated region
    $region34: #{tpu_custom_call.1} parent=1 // pred_check
      _
    $region35: #{tpu_custom_call.1} parent=1 // pred_check_branch
      %89 = sbr.rel (0) target = $region37
    $region36: #{tpu_custom_call.1} parent=1 // pred_region
      %s91 = ssub.s32 256, 256
      %92 = vsyncadd [#allocation12], %s91
      %s93 = sshll.u32 [#allocation11], 4
      %s94 = int_to_ptr.vmem [resolvable:$true] %s93
      %99 = dma.hbm_to_vmem [thread:$0]  %s8, 256, %s94, [#allocation12], 128, 128, 8
    $region37: #{tpu_custom_call.1} parent=1 // pred_fallthru
      _
    // Predicated region
    $region38: #{tpu_custom_call.1} parent=1 // pred_check
      _
    $region39: #{tpu_custom_call.1} parent=1 // pred_check_branch
      %101 = sbr.rel (0) target = $region41
    $region40: #{tpu_custom_call.1} parent=1 // pred_region
      %102 = dma.done [#allocation3], 256
    $region41: #{tpu_custom_call.1} parent=1 // pred_fallthru
      _
    // Predicated region
    $region42: #{tpu_custom_call.1} parent=1 // pred_check
      _
    $region43: #{tpu_custom_call.1} parent=1 // pred_check_branch
      %104 = sbr.rel (0) target = $region45
    $region44: #{tpu_custom_call.1} parent=1 // pred_region
      %105 = dma.done [#allocation6], 256
    $region45: #{tpu_custom_call.1} parent=1 // pred_fallthru
      _
    // Predicated region
    $region46: #{tpu_custom_call.1} parent=1 // pred_check
      _
    $region47: #{tpu_custom_call.1} parent=1 // pred_check_branch
      %107 = sbr.rel (0) target = $region49
    $region48: #{tpu_custom_call.1} parent=1 // pred_region
      %108 = dma.done [#allocation6], 256
    $region49: #{tpu_custom_call.1} parent=1 // pred_fallthru
      _
    // Predicated region
    $region50: #{tpu_custom_call.1} parent=1 // pred_check
      _
    $region51: #{tpu_custom_call.1} parent=1 // pred_check_branch
      %110 = sbr.rel (0) target = $region53
    $region52: #{tpu_custom_call.1} parent=1 // pred_region
      %111 = dma.done [#allocation9], 512
    $region53: #{tpu_custom_call.1} parent=1 // pred_fallthru
      _
    // Predicated region
    $region54: #{tpu_custom_call.1} parent=1 // pred_check
      _
    $region55: #{tpu_custom_call.1} parent=1 // pred_check_branch
      %113 = sbr.rel (0) target = $region57
    $region56: #{tpu_custom_call.1} parent=1 // pred_region
      %114 = dma.done [#allocation9], 512
    $region57: #{tpu_custom_call.1} parent=1 // pred_fallthru
      _
    // Predicated region
    $region58: #{tpu_custom_call.1} parent=1 // pred_check
      _
    $region59: #{tpu_custom_call.1} parent=1 // pred_check_branch
      %116 = sbr.rel (0) target = $region61
    $region60: #{tpu_custom_call.1} parent=1 // pred_region
      %117 = dma.done [#allocation12], 256
    $region61: #{tpu_custom_call.1} parent=1 // pred_fallthru
      _
    %v119 = vld [vmem:[#allocation2] sm:$0xff]
    %v120 = vld [vmem:[#allocation2 + $0x8] sm:$0xff]
    %v121 = vld [vmem:[#allocation11] sm:$0x1]
    %v122 = vpack.c.bf16 %v120, %v119
    %v123 = vld [vmem:[#allocation7] sm:$0xf]
    %v124 = vld [vmem:[#allocation7 + $0x4] sm:$0xf]
    %v125 = vld [vmem:[#allocation7 + $0x8] sm:$0xf]
    %v126 = vld [vmem:[#allocation7 + $0xc] sm:$0xf]
    %v127 = vlaneseq
    %v128 = vshrl.u32 %v127, 7
    %v129 = vsub.s32 0, %v128
    %v130 = vrot.slane %v121, %v129
    %v135 = vunpack.c.l.b16 %v123
    %v136 = vunpack.c.l.b16 %v124
    %v137 = vunpack.c.l.b16 %v125
    %v138 = vunpack.c.l.b16 %v126
    %v139 = vpack.c.b16 %v136, %v135
    %v140 = vpack.c.b16 %v138, %v137
    %vm143 = vcmask 261120
    %v145 = vsel %vm143, %v122, 0
    %147 = vmatprep.subr.bf16.mxu0 0
    %148 = vmatpush1.bf16.msra.mxu0 0
    %149 = vmatprep.subr.bf16.mxu0 0
    %150 = vmatpush1.bf16.msra.mxu0 0
    %151 = vmatprep.subr.bf16.mxu0 0
    %152 = vmatpush1.bf16.msra.mxu0 0
    %153 = vmatprep.subr.bf16.mxu0 0
    %154 = vmatpush1.bf16.msra.mxu0 0
    %155 = vmatprep.subr.bf16.mxu0 0
    %156 = vmatpush1.bf16.msra.mxu0 0
    %157 = vmatprep.subr.bf16.mxu0 0
    %158 = vmatpush1.bf16.msra.mxu0 0
    %159 = vmatprep.subr.bf16.mxu0 0
    %160 = vmatpush1.bf16.msra.mxu0 %v140
    %161 = vmatprep.subr.bf16.mxu0 0
    %162 = vmatpush1.bf16.msra.mxu0 %v139
    %163 = vmatprep.subr.bf16.mxu0 0
    %164 = vmatpush2.bf16.msra.mxu0 0
    %165 = vmatprep.subr.bf16.mxu0 0
    %166 = vmatpush2.bf16.msra.mxu0 0
    %167 = vmatprep.subr.bf16.mxu0 0
    %168 = vmatpush2.bf16.msra.mxu0 0
    %169 = vmatprep.subr.bf16.mxu0 0
    %170 = vmatpush2.bf16.msra.mxu0 0
    %171 = vmatprep.subr.bf16.mxu0 0
    %172 = vmatpush2.bf16.msra.mxu0 0
    %173 = vmatprep.subr.bf16.mxu0 0
    %174 = vmatpush2.bf16.msra.mxu0 0
    %175 = vmatprep.subr.bf16.mxu0 0
    %176 = vmatpush2.bf16.msra.mxu0 0
    %177 = vmatprep.subr.bf16.mxu0 0
    %178 = vmatpush2.bf16.msra.mxu0 0
    %179 = vmatprep.mubr.bf16.mxu0 0
    %180 = vmatmul.mubr.bf16.gmra.mxu0 %v145
    %v181 = vpop.f32.mrf.mxu0
    %v182 = vadd.f32 %v130, %v181
    %v183 = vpop.f32.mrf.mxu0
    %v184 = vpop.f32.mrf.mxu0
    %v185 = vadd.f32 %v130, %v184
    %v186 = vpop.f32.mrf.mxu0
    %187 = vdwg.mxu0
    %v188 = vld [vmem:[#allocation11 + $0x1] sm:$0x1]
    %v189 = vld [vmem:[#allocation11 + $0x2] sm:$0x1]
    %v190 = vadd.f32 %v182, %v185
    %v191 = vrot.slane %v190, 4
    %v192 = vadd.f32 %v190, %v191
    %v193 = vrot.slane %v192, 2
    %v194 = vadd.f32 %v192, %v193
    %v195 = vrot.slane %v194, 1
    %v196 = vadd.f32 %v194, %v195
    %v197 = vmul.f32 %v196, 0.0625
    %v198 = vmul.f32 %v182, %v182
    %v199 = vmul.f32 %v185, %v185
    %v200 = vadd.f32 %v198, %v199
    %v201 = vrot.slane %v200, 4
    %v202 = vadd.f32 %v200, %v201
    %v203 = vrot.slane %v202, 2
    %v204 = vadd.f32 %v202, %v203
    %v205 = vrot.slane %v204, 1
    %v206 = vadd.f32 %v204, %v205
    %v207 = vmul.f32 %v206, 0.0625
    %v208 = vmul.f32 %v197, %v197
    %v209 = vsub.f32 %v207, %v208
    %v210 = vadd.f32 %v209, 1e-05
    %v211 = vrsqrt.pop %v210
    %v212 = vmul.f32 %v188, %v211
    %v213 = vmul.f32 %v197, %v212
    %v214 = vsub.f32 %v189, %v213
    %v215 = vlaneseq
    %v216 = vshrl.u32 %v215, 7
    %v217 = vsub.s32 0, %v216
    %v218 = vrot.slane %v212, %v217
    %v219 = vmul.f32 %v182, %v218
    %v220 = vmul.f32 %v185, %v218
    %v221 = vlaneseq
    %v222 = vshrl.u32 %v221, 7
    %v223 = vsub.s32 0, %v222
    %v224 = vrot.slane %v214, %v223
    %v225 = vadd.f32 %v219, %v224
    %v226 = vadd.f32 %v220, %v224
    %v227 = vmul.f32 %v225, 0.2
    %v228 = vmul.f32 %v226, 0.2
    %v229 = vmax.f32 %v225, %v227
    %v230 = vmax.f32 %v226, %v228
    %v231 = vld [vmem:[#allocation11 + $0x3] sm:$0x1]
    %v232 = vpack.c.bf16 %v230, %v229
    %v233 = vld [vmem:[%s3] sm:$0xf]
    %v234 = vld [vmem:[%s3 + $0x4] sm:$0xf]
    %v235 = vld [vmem:[%s3 + $0x8] sm:$0xf]
    %v236 = vld [vmem:[%s3 + $0xc] sm:$0xf]
    %v237 = vld [vmem:[%s3 + $0x10] sm:$0xf]
    %v238 = vld [vmem:[%s3 + $0x14] sm:$0xf]
    %v239 = vld [vmem:[%s3 + $0x18] sm:$0xf]
    %v240 = vld [vmem:[%s3 + $0x1c] sm:$0xf]
    %v241 = vld [vmem:[%s3 + $0x20] sm:$0xf]
    %v242 = vld [vmem:[%s3 + $0x24] sm:$0xf]
    %v243 = vld [vmem:[%s3 + $0x28] sm:$0xf]
    %v244 = vld [vmem:[%s3 + $0x2c] sm:$0xf]
    %v245 = vld [vmem:[%s3 + $0x30] sm:$0xf]
    %v246 = vld [vmem:[%s3 + $0x34] sm:$0xf]
    %v247 = vld [vmem:[%s3 + $0x38] sm:$0xf]
    %v248 = vld [vmem:[%s3 + $0x3c] sm:$0xf]
    %v249 = vlaneseq
    %v250 = vshrl.u32 %v249, 7
    %v251 = vsub.s32 0, %v250
    %v252 = vrot.slane %v231, %v251
    %v269 = vunpack.c.l.b16 %v233
    %v270 = vunpack.c.l.b16 %v234
    %v271 = vunpack.c.l.b16 %v235
    %v272 = vunpack.c.l.b16 %v236
    %v273 = vunpack.c.l.b16 %v237
    %v274 = vunpack.c.l.b16 %v238
    %v275 = vunpack.c.l.b16 %v239
    %v276 = vunpack.c.l.b16 %v240
    %v277 = vunpack.c.l.b16 %v241
    %v278 = vunpack.c.l.b16 %v242
    %v279 = vunpack.c.l.b16 %v243
    %v280 = vunpack.c.l.b16 %v244
    %v281 = vunpack.c.l.b16 %v245
    %v282 = vunpack.c.l.b16 %v246
    %v283 = vunpack.c.l.b16 %v247
    %v284 = vunpack.c.l.b16 %v248
    %v285 = vpack.c.b16 %v270, %v269
    %v286 = vpack.c.b16 %v272, %v271
    %v287 = vpack.c.b16 %v274, %v273
    %v288 = vpack.c.b16 %v276, %v275
    %v289 = vpack.c.b16 %v278, %v277
    %v290 = vpack.c.b16 %v280, %v279
    %v291 = vpack.c.b16 %v282, %v281
    %v292 = vpack.c.b16 %v284, %v283
    %301 = vmatprep.subr.bf16.mxu0 0
    %302 = vmatpush1.bf16.msra.mxu0 %v292
    %303 = vmatprep.subr.bf16.mxu0 0
    %304 = vmatpush1.bf16.msra.mxu0 %v291
    %305 = vmatprep.subr.bf16.mxu0 0
    %306 = vmatpush1.bf16.msra.mxu0 %v290
    %307 = vmatprep.subr.bf16.mxu0 0
    %308 = vmatpush1.bf16.msra.mxu0 %v289
    %309 = vmatprep.subr.bf16.mxu0 0
    %310 = vmatpush1.bf16.msra.mxu0 %v288
    %311 = vmatprep.subr.bf16.mxu0 0
    %312 = vmatpush1.bf16.msra.mxu0 %v287
    %313 = vmatprep.subr.bf16.mxu0 0
    %314 = vmatpush1.bf16.msra.mxu0 %v286
    %315 = vmatprep.subr.bf16.mxu0 0
    %316 = vmatpush1.bf16.msra.mxu0 %v285
    %317 = vmatprep.subr.bf16.mxu0 0
    %318 = vmatpush2.bf16.msra.mxu0 0
    %319 = vmatprep.subr.bf16.mxu0 0
    %320 = vmatpush2.bf16.msra.mxu0 0
    %321 = vmatprep.subr.bf16.mxu0 0
    %322 = vmatpush2.bf16.msra.mxu0 0
    %323 = vmatprep.subr.bf16.mxu0 0
    %324 = vmatpush2.bf16.msra.mxu0 0
    %325 = vmatprep.subr.bf16.mxu0 0
    %326 = vmatpush2.bf16.msra.mxu0 0
    %327 = vmatprep.subr.bf16.mxu0 0
    %328 = vmatpush2.bf16.msra.mxu0 0
    %329 = vmatprep.subr.bf16.mxu0 0
    %330 = vmatpush2.bf16.msra.mxu0 0
    %331 = vmatprep.subr.bf16.mxu0 0
    %332 = vmatpush2.bf16.msra.mxu0 0
    %333 = vmatprep.mubr.bf16.mxu0 0
    %334 = vmatmul.mubr.bf16.gmra.mxu0 %v232
    %v335 = vpop.f32.mrf.mxu0
    %v336 = vadd.f32 %v252, %v335
    %v337 = vpop.f32.mrf.mxu0
    %v338 = vpop.f32.mrf.mxu0
    %v339 = vadd.f32 %v252, %v338
    %v340 = vpop.f32.mrf.mxu0
    %341 = vdwg.mxu0
    %v342 = vld [vmem:[#allocation11 + $0x4] sm:$0x1]
    %v343 = vld [vmem:[#allocation11 + $0x5] sm:$0x1]
    %vm344 = vcmask 523264
    %v345 = vsel %vm344, %v336, 0.0
    %v346 = vsel %vm344, %v339, 0.0
    %v347 = vadd.f32 %v345, %v346
    %v348 = vrot.slane %v347, 4
    %v349 = vadd.f32 %v347, %v348
    %v350 = vrot.slane %v349, 2
    %v351 = vadd.f32 %v349, %v350
    %v352 = vrot.slane %v351, 1
    %v353 = vadd.f32 %v351, %v352
    %v354 = vmul.f32 %v353, 0.0625
    %v355 = vmul.f32 %v336, %v336
    %v356 = vmul.f32 %v339, %v339
    %v357 = vsel %vm344, %v355, 0.0
    %v358 = vsel %vm344, %v356, 0.0
    %v359 = vadd.f32 %v357, %v358
    %v360 = vrot.slane %v359, 4
    %v361 = vadd.f32 %v359, %v360
    %v362 = vrot.slane %v361, 2
    %v363 = vadd.f32 %v361, %v362
    %v364 = vrot.slane %v363, 1
    %v365 = vadd.f32 %v363, %v364
    %v366 = vmul.f32 %v365, 0.0625
    %v367 = vmul.f32 %v354, %v354
    %v368 = vsub.f32 %v366, %v367
    %v369 = vadd.f32 %v368, 1e-05
    %v370 = vrsqrt.pop %v369
    %v371 = vmul.f32 %v342, %v370
    %v372 = vmul.f32 %v354, %v371
    %v373 = vsub.f32 %v343, %v372
    %v374 = vlaneseq
    %v375 = vshrl.u32 %v374, 7
    %v376 = vsub.s32 0, %v375
    %v377 = vrot.slane %v371, %v376
    %v378 = vmul.f32 %v336, %v377
    %v379 = vmul.f32 %v339, %v377
    %v380 = vlaneseq
    %v381 = vshrl.u32 %v380, 7
    %v382 = vsub.s32 0, %v381
    %v383 = vrot.slane %v373, %v382
    %v384 = vadd.f32 %v378, %v383
    %v385 = vadd.f32 %v379, %v383
    %v386 = vmul.f32 %v384, 0.2
    %v387 = vmul.f32 %v385, 0.2
    %v388 = vmax.f32 %v384, %v386
    %v389 = vmax.f32 %v385, %v387
    %v390 = vld [vmem:[#allocation11 + $0x6] sm:$0x1]
    %v391 = vpack.c.bf16 %v389, %v388
    %v392 = vld [vmem:[%s4] sm:$0xf]
    %v393 = vld [vmem:[%s4 + $0x4] sm:$0xf]
    %v394 = vld [vmem:[%s4 + $0x8] sm:$0xf]
    %v395 = vld [vmem:[%s4 + $0xc] sm:$0xf]
    %v396 = vld [vmem:[%s4 + $0x10] sm:$0xf]
    %v397 = vld [vmem:[%s4 + $0x14] sm:$0xf]
    %v398 = vld [vmem:[%s4 + $0x18] sm:$0xf]
    %v399 = vld [vmem:[%s4 + $0x1c] sm:$0xf]
    %v400 = vlaneseq
    %v401 = vshrl.u32 %v400, 7
    %v402 = vsub.s32 0, %v401
    %v403 = vrot.slane %v390, %v402
    %v412 = vunpack.c.l.b16 %v392
    %v413 = vunpack.c.l.b16 %v393
    %v414 = vunpack.c.l.b16 %v394
    %v415 = vunpack.c.l.b16 %v395
    %v416 = vunpack.c.l.b16 %v396
    %v417 = vunpack.c.l.b16 %v397
    %v418 = vunpack.c.l.b16 %v398
    %v419 = vunpack.c.l.b16 %v399
    %v420 = vpack.c.b16 %v413, %v412
    %v421 = vpack.c.b16 %v415, %v414
    %v422 = vpack.c.b16 %v417, %v416
    %v423 = vpack.c.b16 %v419, %v418
    %v429 = vsel %vm344, %v391, 0
    %431 = vmatprep.subr.bf16.mxu0 0
    %432 = vmatpush1.bf16.msra.mxu0 0
    %433 = vmatprep.subr.bf16.mxu0 0
    %434 = vmatpush1.bf16.msra.mxu0 0
    %435 = vmatprep.subr.bf16.mxu0 0
    %436 = vmatpush1.bf16.msra.mxu0 0
    %437 = vmatprep.subr.bf16.mxu0 0
    %438 = vmatpush1.bf16.msra.mxu0 0
    %439 = vmatprep.subr.bf16.mxu0 0
    %440 = vmatpush1.bf16.msra.mxu0 %v423
    %441 = vmatprep.subr.bf16.mxu0 0
    %442 = vmatpush1.bf16.msra.mxu0 %v422
    %443 = vmatprep.subr.bf16.mxu0 0
    %444 = vmatpush1.bf16.msra.mxu0 %v421
    %445 = vmatprep.subr.bf16.mxu0 0
    %446 = vmatpush1.bf16.msra.mxu0 %v420
    %447 = vmatprep.subr.bf16.mxu0 0
    %448 = vmatpush2.bf16.msra.mxu0 0
    %449 = vmatprep.subr.bf16.mxu0 0
    %450 = vmatpush2.bf16.msra.mxu0 0
    %451 = vmatprep.subr.bf16.mxu0 0
    %452 = vmatpush2.bf16.msra.mxu0 0
    %453 = vmatprep.subr.bf16.mxu0 0
    %454 = vmatpush2.bf16.msra.mxu0 0
    %455 = vmatprep.subr.bf16.mxu0 0
    %456 = vmatpush2.bf16.msra.mxu0 0
    %457 = vmatprep.subr.bf16.mxu0 0
    %458 = vmatpush2.bf16.msra.mxu0 0
    %459 = vmatprep.subr.bf16.mxu0 0
    %460 = vmatpush2.bf16.msra.mxu0 0
    %461 = vmatprep.subr.bf16.mxu0 0
    %462 = vmatpush2.bf16.msra.mxu0 0
    %463 = vmatprep.mubr.bf16.mxu0 0
    %464 = vmatmul.mubr.bf16.gmra.mxu0 %v429
    %v465 = vpop.f32.mrf.mxu0
    %v466 = vadd.f32 %v403, %v465
    %v467 = vpop.f32.mrf.mxu0
    %v468 = vpop.f32.mrf.mxu0
    %v469 = vadd.f32 %v403, %v468
    %v470 = vpop.f32.mrf.mxu0
    %471 = vdwg.mxu0
    %v472 = vld [vmem:[#allocation5] sm:$0xff]
    %v473 = vld [vmem:[#allocation5 + $0x8] sm:$0xff]
    %v474 = vmul.f32 %v466, 0.5
    %v475 = vmul.f32 %v469, 0.5
    %v476 = vmul.f32 %v474, 1.442695
    %v477 = vpow.pop %v476
    %v478 = vmul.f32 %v475, 1.442695
    %v479 = vpow.pop %v478
    %482 = vrot.lane.b32.xlu0 %v477, 64
    %v483 = vpop.permute.xlu0 %482
    %484 = vrot.lane.b32.xlu0 %v479, 64
    %v485 = vpop.permute.xlu0 %484
    %v488 = vmul.f32 %v472, %v483
    %v489 = vmul.f32 %v473, %v485
    %v490 = vadd.f32 %v466, %v488
    %v491 = vadd.f32 %v469, %v489
    %v492 = vld [vmem:[#allocation11 + $0x7] sm:$0x1]
    %v493 = vpack.c.bf16 %v491, %v490
    %v494 = vld [vmem:[#allocation8] sm:$0xf]
    %v495 = vld [vmem:[#allocation8 + $0x4] sm:$0xf]
    %v496 = vld [vmem:[#allocation8 + $0x8] sm:$0xf]
    %v497 = vld [vmem:[#allocation8 + $0xc] sm:$0xf]
    %v498 = vld [vmem:[#allocation8 + $0x10] sm:$0xf]
    %v499 = vld [vmem:[#allocation8 + $0x14] sm:$0xf]
    %v500 = vld [vmem:[#allocation8 + $0x18] sm:$0xf]
    %v501 = vld [vmem:[#allocation8 + $0x1c] sm:$0xf]
    %v502 = vlaneseq
    %v503 = vshrl.u32 %v502, 7
    %v504 = vsub.s32 0, %v503
    %v505 = vrot.slane %v492, %v504
    %v514 = vunpack.c.l.b16 %v494
    %v515 = vunpack.c.l.b16 %v495
    %v516 = vunpack.c.l.b16 %v496
    %v517 = vunpack.c.l.b16 %v497
    %v518 = vunpack.c.l.b16 %v498
    %v519 = vunpack.c.l.b16 %v499
    %v520 = vunpack.c.l.b16 %v500
    %v521 = vunpack.c.l.b16 %v501
    %v522 = vpack.c.b16 %v515, %v514
    %v523 = vpack.c.b16 %v517, %v516
    %v524 = vpack.c.b16 %v519, %v518
    %v525 = vpack.c.b16 %v521, %v520
    %v531 = vsel %vm344, %v493, 0
    %533 = vmatprep.subr.bf16.mxu0 0
    %534 = vmatpush1.bf16.msra.mxu0 0
    %535 = vmatprep.subr.bf16.mxu0 0
    %536 = vmatpush1.bf16.msra.mxu0 0
    %537 = vmatprep.subr.bf16.mxu0 0
    %538 = vmatpush1.bf16.msra.mxu0 0
    %539 = vmatprep.subr.bf16.mxu0 0
    %540 = vmatpush1.bf16.msra.mxu0 0
    %541 = vmatprep.subr.bf16.mxu0 0
    %542 = vmatpush1.bf16.msra.mxu0 %v525
    %543 = vmatprep.subr.bf16.mxu0 0
    %544 = vmatpush1.bf16.msra.mxu0 %v524
    %545 = vmatprep.subr.bf16.mxu0 0
    %546 = vmatpush1.bf16.msra.mxu0 %v523
    %547 = vmatprep.subr.bf16.mxu0 0
    %548 = vmatpush1.bf16.msra.mxu0 %v522
    %549 = vmatprep.subr.bf16.mxu0 0
    %550 = vmatpush2.bf16.msra.mxu0 0
    %551 = vmatprep.subr.bf16.mxu0 0
    %552 = vmatpush2.bf16.msra.mxu0 0
    %553 = vmatprep.subr.bf16.mxu0 0
    %554 = vmatpush2.bf16.msra.mxu0 0
    %555 = vmatprep.subr.bf16.mxu0 0
    %556 = vmatpush2.bf16.msra.mxu0 0
    %557 = vmatprep.subr.bf16.mxu0 0
    %558 = vmatpush2.bf16.msra.mxu0 0
    %559 = vmatprep.subr.bf16.mxu0 0
    %560 = vmatpush2.bf16.msra.mxu0 0
    %561 = vmatprep.subr.bf16.mxu0 0
    %562 = vmatpush2.bf16.msra.mxu0 0
    %563 = vmatprep.subr.bf16.mxu0 0
    %564 = vmatpush2.bf16.msra.mxu0 0
    %565 = vmatprep.mubr.bf16.mxu0 0
    %566 = vmatmul.mubr.bf16.gmra.mxu0 %v531
    %v567 = vpop.f32.mrf.mxu0
    %v568 = vadd.f32 %v505, %v567
    %v569 = vpop.f32.mrf.mxu0
    %v570 = vpop.f32.mrf.mxu0
    %v571 = vadd.f32 %v505, %v570
    %v572 = vpop.f32.mrf.mxu0
    %573 = vdwg.mxu0
    %v574 = vld [vmem:[#allocation11 + $0x8] sm:$0x1]
    %v575 = vld [vmem:[#allocation11 + $0x9] sm:$0x1]
    %v576 = vsel %vm344, %v568, 0.0
    %v577 = vsel %vm344, %v571, 0.0
    %v578 = vadd.f32 %v576, %v577
    %v579 = vrot.slane %v578, 4
    %v580 = vadd.f32 %v578, %v579
    %v581 = vrot.slane %v580, 2
    %v582 = vadd.f32 %v580, %v581
    %v583 = vrot.slane %v582, 1
    %v584 = vadd.f32 %v582, %v583
    %v585 = vmul.f32 %v584, 0.0625
    %v586 = vmul.f32 %v568, %v568
    %v587 = vmul.f32 %v571, %v571
    %v588 = vsel %vm344, %v586, 0.0
    %v589 = vsel %vm344, %v587, 0.0
    %v590 = vadd.f32 %v588, %v589
    %v591 = vrot.slane %v590, 4
    %v592 = vadd.f32 %v590, %v591
    %v593 = vrot.slane %v592, 2
    %v594 = vadd.f32 %v592, %v593
    %v595 = vrot.slane %v594, 1
    %v596 = vadd.f32 %v594, %v595
    %v597 = vmul.f32 %v596, 0.0625
    %v598 = vmul.f32 %v585, %v585
    %v599 = vsub.f32 %v597, %v598
    %v600 = vadd.f32 %v599, 1e-05
    %v601 = vrsqrt.pop %v600
    %v602 = vmul.f32 %v574, %v601
    %v603 = vmul.f32 %v585, %v602
    %v604 = vsub.f32 %v575, %v603
    %v605 = vlaneseq
    %v606 = vshrl.u32 %v605, 7
    %v607 = vsub.s32 0, %v606
    %v608 = vrot.slane %v602, %v607
    %v609 = vmul.f32 %v568, %v608
    %v610 = vmul.f32 %v571, %v608
    %v611 = vlaneseq
    %v612 = vshrl.u32 %v611, 7
    %v613 = vsub.s32 0, %v612
    %v614 = vrot.slane %v604, %v613
    %v615 = vadd.f32 %v609, %v614
    %v616 = vadd.f32 %v610, %v614
    %v617 = vmul.f32 %v615, 0.2
    %v618 = vmul.f32 %v616, 0.2
    %v619 = vmax.f32 %v615, %v617
    %v620 = vmax.f32 %v616, %v618
    %v621 = vld [vmem:[#allocation11 + $0xa] sm:$0x1]
    %v622 = vpack.c.bf16 %v620, %v619
    %v623 = vld [vmem:[#allocation10] sm:$0xf]
    %v624 = vld [vmem:[#allocation10 + $0x4] sm:$0xf]
    %v625 = vld [vmem:[#allocation10 + $0x8] sm:$0xf]
    %v626 = vld [vmem:[#allocation10 + $0xc] sm:$0xf]
    %v627 = vld [vmem:[#allocation10 + $0x10] sm:$0xf]
    %v628 = vld [vmem:[#allocation10 + $0x14] sm:$0xf]
    %v629 = vld [vmem:[#allocation10 + $0x18] sm:$0xf]
    %v630 = vld [vmem:[#allocation10 + $0x1c] sm:$0xf]
    %v631 = vlaneseq
    %v632 = vshrl.u32 %v631, 7
    %v633 = vsub.s32 0, %v632
    %v634 = vrot.slane %v621, %v633
    %v643 = vunpack.c.l.b16 %v623
    %v644 = vunpack.c.l.b16 %v624
    %v645 = vunpack.c.l.b16 %v625
    %v646 = vunpack.c.l.b16 %v626
    %v647 = vunpack.c.l.b16 %v627
    %v648 = vunpack.c.l.b16 %v628
    %v649 = vunpack.c.l.b16 %v629
    %v650 = vunpack.c.l.b16 %v630
    %v651 = vpack.c.b16 %v644, %v643
    %v652 = vpack.c.b16 %v646, %v645
    %v653 = vpack.c.b16 %v648, %v647
    %v654 = vpack.c.b16 %v650, %v649
    %v660 = vsel %vm344, %v622, 0
    %662 = vmatprep.subr.bf16.mxu0 0
    %663 = vmatpush1.bf16.msra.mxu0 0
    %664 = vmatprep.subr.bf16.mxu0 0
    %665 = vmatpush1.bf16.msra.mxu0 0
    %666 = vmatprep.subr.bf16.mxu0 0
    %667 = vmatpush1.bf16.msra.mxu0 0
    %668 = vmatprep.subr.bf16.mxu0 0
    %669 = vmatpush1.bf16.msra.mxu0 0
    %670 = vmatprep.subr.bf16.mxu0 0
    %671 = vmatpush1.bf16.msra.mxu0 %v654
    %672 = vmatprep.subr.bf16.mxu0 0
    %673 = vmatpush1.bf16.msra.mxu0 %v653
    %674 = vmatprep.subr.bf16.mxu0 0
    %675 = vmatpush1.bf16.msra.mxu0 %v652
    %676 = vmatprep.subr.bf16.mxu0 0
    %677 = vmatpush1.bf16.msra.mxu0 %v651
    %678 = vmatprep.subr.bf16.mxu0 0
    %679 = vmatpush2.bf16.msra.mxu0 0
    %680 = vmatprep.subr.bf16.mxu0 0
    %681 = vmatpush2.bf16.msra.mxu0 0
    %682 = vmatprep.subr.bf16.mxu0 0
    %683 = vmatpush2.bf16.msra.mxu0 0
    %684 = vmatprep.subr.bf16.mxu0 0
    %685 = vmatpush2.bf16.msra.mxu0 0
    %686 = vmatprep.subr.bf16.mxu0 0
    %687 = vmatpush2.bf16.msra.mxu0 0
    %688 = vmatprep.subr.bf16.mxu0 0
    %689 = vmatpush2.bf16.msra.mxu0 0
    %690 = vmatprep.subr.bf16.mxu0 0
    %691 = vmatpush2.bf16.msra.mxu0 0
    %692 = vmatprep.subr.bf16.mxu0 0
    %693 = vmatpush2.bf16.msra.mxu0 0
    %694 = vmatprep.mubr.bf16.mxu0 0
    %695 = vmatmul.mubr.bf16.gmra.mxu0 %v660
    %v696 = vpop.f32.mrf.mxu0
    %v697 = vadd.f32 %v634, %v696
    %v698 = vpop.f32.mrf.mxu0
    %v699 = vpop.f32.mrf.mxu0
    %v700 = vadd.f32 %v634, %v699
    %v701 = vpop.f32.mrf.mxu0
    %702 = vdwg.mxu0
    %v703 = vld [vmem:[#allocation11 + $0xb] sm:$0x1]
    %v704 = vld [vmem:[#allocation11 + $0xc] sm:$0x1]
    %v705 = vadd.f32 %v697, %v700
    %v706 = vrot.slane %v705, 4
    %v707 = vadd.f32 %v705, %v706
    %v708 = vrot.slane %v707, 2
    %v709 = vadd.f32 %v707, %v708
    %v710 = vrot.slane %v709, 1
    %v711 = vadd.f32 %v709, %v710
    %v712 = vmul.f32 %v711, 0.0625
    %v713 = vmul.f32 %v697, %v697
    %v714 = vmul.f32 %v700, %v700
    %v715 = vadd.f32 %v713, %v714
    %v716 = vrot.slane %v715, 4
    %v717 = vadd.f32 %v715, %v716
    %v718 = vrot.slane %v717, 2
    %v719 = vadd.f32 %v717, %v718
    %v720 = vrot.slane %v719, 1
    %v721 = vadd.f32 %v719, %v720
    %v722 = vmul.f32 %v721, 0.0625
    %v723 = vmul.f32 %v712, %v712
    %v724 = vsub.f32 %v722, %v723
    %v725 = vadd.f32 %v724, 1e-05
    %v726 = vrsqrt.pop %v725
    %v727 = vmul.f32 %v703, %v726
    %v728 = vmul.f32 %v712, %v727
    %v729 = vsub.f32 %v704, %v728
    %v730 = vlaneseq
    %v731 = vshrl.u32 %v730, 7
    %v732 = vsub.s32 0, %v731
    %v733 = vrot.slane %v727, %v732
    %v734 = vmul.f32 %v697, %v733
    %v735 = vmul.f32 %v700, %v733
    %v736 = vlaneseq
    %v737 = vshrl.u32 %v736, 7
    %v738 = vsub.s32 0, %v737
    %v739 = vrot.slane %v729, %v738
    %v740 = vadd.f32 %v734, %v739
    %v741 = vadd.f32 %v735, %v739
    %v742 = vmul.f32 %v740, 0.2
    %v743 = vmul.f32 %v741, 0.2
    %v744 = vmax.f32 %v740, %v742
    %v745 = vmax.f32 %v741, %v743
    %v746 = vld [vmem:[#allocation11 + $0xd] sm:$0x1]
    %v747 = vpack.c.bf16 %v745, %v744
    %v748 = vld [vmem:[%s7] sm:$0xf]
    %v749 = vld [vmem:[%s7 + $0x4] sm:$0xf]
    %v750 = vld [vmem:[%s7 + $0x8] sm:$0xf]
    %v751 = vld [vmem:[%s7 + $0xc] sm:$0xf]
    %v752 = vld [vmem:[%s7 + $0x10] sm:$0xf]
    %v753 = vld [vmem:[%s7 + $0x14] sm:$0xf]
    %v754 = vld [vmem:[%s7 + $0x18] sm:$0xf]
    %v755 = vld [vmem:[%s7 + $0x1c] sm:$0xf]
    %v756 = vld [vmem:[%s7 + $0x20] sm:$0xf]
    %v757 = vld [vmem:[%s7 + $0x24] sm:$0xf]
    %v758 = vld [vmem:[%s7 + $0x28] sm:$0xf]
    %v759 = vld [vmem:[%s7 + $0x2c] sm:$0xf]
    %v760 = vld [vmem:[%s7 + $0x30] sm:$0xf]
    %v761 = vld [vmem:[%s7 + $0x34] sm:$0xf]
    %v762 = vld [vmem:[%s7 + $0x38] sm:$0xf]
    %v763 = vld [vmem:[%s7 + $0x3c] sm:$0xf]
    %v764 = vlaneseq
    %v765 = vshrl.u32 %v764, 7
    %v766 = vsub.s32 0, %v765
    %v767 = vrot.slane %v746, %v766
    %v784 = vunpack.c.l.b16 %v748
    %v785 = vunpack.c.l.b16 %v749
    %v786 = vunpack.c.l.b16 %v750
    %v787 = vunpack.c.l.b16 %v751
    %v788 = vunpack.c.l.b16 %v752
    %v789 = vunpack.c.l.b16 %v753
    %v790 = vunpack.c.l.b16 %v754
    %v791 = vunpack.c.l.b16 %v755
    %v792 = vunpack.c.l.b16 %v756
    %v793 = vunpack.c.l.b16 %v757
    %v794 = vunpack.c.l.b16 %v758
    %v795 = vunpack.c.l.b16 %v759
    %v796 = vunpack.c.l.b16 %v760
    %v797 = vunpack.c.l.b16 %v761
    %v798 = vunpack.c.l.b16 %v762
    %v799 = vunpack.c.l.b16 %v763
    %v800 = vpack.c.b16 %v785, %v784
    %v801 = vpack.c.b16 %v787, %v786
    %v802 = vpack.c.b16 %v789, %v788
    %v803 = vpack.c.b16 %v791, %v790
    %v804 = vpack.c.b16 %v793, %v792
    %v805 = vpack.c.b16 %v795, %v794
    %v806 = vpack.c.b16 %v797, %v796
    %v807 = vpack.c.b16 %v799, %v798
    %816 = vmatprep.subr.bf16.mxu0 0
    %817 = vmatpush1.bf16.msra.mxu0 %v807
    %818 = vmatprep.subr.bf16.mxu0 0
    %819 = vmatpush1.bf16.msra.mxu0 %v806
    %820 = vmatprep.subr.bf16.mxu0 0
    %821 = vmatpush1.bf16.msra.mxu0 %v805
    %822 = vmatprep.subr.bf16.mxu0 0
    %823 = vmatpush1.bf16.msra.mxu0 %v804
    %824 = vmatprep.subr.bf16.mxu0 0
    %825 = vmatpush1.bf16.msra.mxu0 %v803
    %826 = vmatprep.subr.bf16.mxu0 0
    %827 = vmatpush1.bf16.msra.mxu0 %v802
    %828 = vmatprep.subr.bf16.mxu0 0
    %829 = vmatpush1.bf16.msra.mxu0 %v801
    %830 = vmatprep.subr.bf16.mxu0 0
    %831 = vmatpush1.bf16.msra.mxu0 %v800
    %832 = vmatprep.subr.bf16.mxu0 0
    %833 = vmatpush2.bf16.msra.mxu0 0
    %834 = vmatprep.subr.bf16.mxu0 0
    %835 = vmatpush2.bf16.msra.mxu0 0
    %836 = vmatprep.subr.bf16.mxu0 0
    %837 = vmatpush2.bf16.msra.mxu0 0
    %838 = vmatprep.subr.bf16.mxu0 0
    %839 = vmatpush2.bf16.msra.mxu0 0
    %840 = vmatprep.subr.bf16.mxu0 0
    %841 = vmatpush2.bf16.msra.mxu0 0
    %842 = vmatprep.subr.bf16.mxu0 0
    %843 = vmatpush2.bf16.msra.mxu0 0
    %844 = vmatprep.subr.bf16.mxu0 0
    %845 = vmatpush2.bf16.msra.mxu0 0
    %846 = vmatprep.subr.bf16.mxu0 0
    %847 = vmatpush2.bf16.msra.mxu0 0
    %848 = vmatprep.mubr.bf16.mxu0 0
    %849 = vmatmul.mubr.bf16.gmra.mxu0 %v747
    %v850 = vpop.f32.mrf.mxu0
    %v851 = vadd.f32 %v767, %v850
    %v852 = vpop.f32.mrf.mxu0
    %v853 = vpop.f32.mrf.mxu0
    %v854 = vadd.f32 %v767, %v853
    %v855 = vpop.f32.mrf.mxu0
    %856 = vdwg.mxu0
    %v857 = vmul.f32 %v851, 0.5
    %v858 = vmul.f32 %v854, 0.5
    %v859 = vtanh.pop %v857
    %v860 = vtanh.pop %v858
    %v861 = vmul.f32 %v859, 0.5
    %v862 = vmul.f32 %v860, 0.5
    %v863 = vadd.f32 %v861, 0.5
    %v864 = vadd.f32 %v862, 0.5
    %865 = vst [vmem:[#allocation13] sm:$0xff] %v863
    %866 = vst [vmem:[#allocation13 + $0x8] sm:$0xff] %v864
    %867 = vst [vmem:[#allocation14] sm:$0xff] %v466
    %868 = vst [vmem:[#allocation14 + $0x8] sm:$0xff] %v469
    // Predicated region
    $region62: #{tpu_custom_call.1} parent=1 // pred_check
      _
    $region63: #{tpu_custom_call.1} parent=1 // pred_check_branch
      %870 = sbr.rel (0) target = $region65
    $region64: #{tpu_custom_call.1} parent=1 // pred_region
      %s872 = ssub.s32 256, 256
      %873 = vsyncadd [#allocation4], %s872
      %s874 = sshll.u32 [#allocation13], 4
      %s875 = int_to_ptr.vmem [resolvable:$true] %s874
      %880 = dma.vmem_to_hbm [thread:$0]  %s875, 256, %s9, [#allocation4], 128, 128, 8
    $region65: #{tpu_custom_call.1} parent=1 // pred_fallthru
      _
    // Predicated region
    $region66: #{tpu_custom_call.1} parent=1 // pred_check
      _
    $region67: #{tpu_custom_call.1} parent=1 // pred_check_branch
      %882 = sbr.rel (0) target = $region69
    $region68: #{tpu_custom_call.1} parent=1 // pred_region
      %s884 = ssub.s32 256, 256
      %885 = vsyncadd [#allocation15], %s884
      %s886 = sshll.u32 [#allocation14], 4
      %s887 = int_to_ptr.vmem [resolvable:$true] %s886
      %892 = dma.vmem_to_hbm [thread:$0]  %s887, 256, %s10, [#allocation15], 128, 128, 8
    $region69: #{tpu_custom_call.1} parent=1 // pred_fallthru
      _
    // Predicated region
    $region70: #{tpu_custom_call.1} parent=1 // pred_check
      _
    $region71: #{tpu_custom_call.1} parent=1 // pred_check_branch
      %894 = sbr.rel (0) target = $region73
    $region72: #{tpu_custom_call.1} parent=1 // pred_region
      %895 = dma.done [#allocation4], 256
    $region73: #{tpu_custom_call.1} parent=1 // pred_fallthru
      _
    // Predicated region
    $region74: #{tpu_custom_call.1} parent=1 // pred_check
      _
    $region75: #{tpu_custom_call.1} parent=1 // pred_check_branch
      %897 = sbr.rel (0) target = $region77
    $region76: #{tpu_custom_call.1} parent=1 // pred_region
      %898 = dma.done [#allocation15], 256
    $region77: #{tpu_custom_call.1} parent=1 // pred_fallthru
      _
    %899 = vsyncpa [#allocation3], 1
    %900 = vsyncpa [#allocation6], 1
    %901 = vsyncpa [#allocation9], 1
    %902 = vsyncpa [#allocation12], 1
    %903 = vsyncpa [#allocation4], 1
    %904 = vsyncpa [#allocation15], 1

</llo_original>
